<compile_context>
chip_gen: v7x
topology: tpu7x:2x2x1
jax: 0.10.0
libtpu: 0.0.40
codegen_flags: <defaults>
</compile_context>

<pallas_src>
import jax
import jax.numpy as jnp
from jax.experimental import pallas as pl
from jax.experimental.pallas import tpu as pltpu

MIN_CLIP = 1e-6


def _round_up(v, m):
    return ((v + m - 1) // m) * m


def _membership_kernel(x_ref, lamT_ref, lcT_ref, t3_ref, o_ref):
    # x_ref   : (1, D, tile)  spatial tile of one batch element, WH on lanes
    # lamT_ref: (C, D)        lamda transposed
    # lcT_ref : (C, D)        (lamda * c) transposed
    # t3_ref  : (C, 1)        sum_d lamda[d,k] * c[d,k]^2
    # o_ref   : (1, C, tile)
    x = x_ref[0].astype(jnp.float32)            # (D, tile)
    lamT = lamT_ref[...].astype(jnp.float32)    # (C, D)
    lcT = lcT_ref[...].astype(jnp.float32)      # (C, D)
    t3 = t3_ref[...].astype(jnp.float32)        # (C, 1)

    # dist[k, p] = sum_d lam[d,k]*(x[d,p]-c[d,k])^2
    #            = lamT @ (x*x) - 2 * lcT @ x + t3
    dist = (jnp.dot(lamT, x * x, preferred_element_type=jnp.float32)
            - 2.0 * jnp.dot(lcT, x, preferred_element_type=jnp.float32)
            + t3)                                # (C, tile)

    o_ref[0] = jnp.maximum(jnp.exp(-dist), MIN_CLIP).astype(o_ref.dtype)


def membership_forward(x, c, lamda, *, tile_wh=8192):
    """x: (N, D, WH) f32; c, lamda: (D, C) f32 -> (N, C, WH) f32."""
    assert x.ndim == 3 and c.ndim == 2 and lamda.ndim == 2
    N, D, WH = x.shape
    assert c.shape[0] == D and lamda.shape == c.shape
    C = c.shape[1]

    x = x.astype(jnp.float32)
    c = c.astype(jnp.float32)
    lamda = lamda.astype(jnp.float32)

    # Hoisted per-class parameter math (tiny, computed once in the wrapper).
    lamT = lamda.T                                    # (C, D)
    lcT = (lamda * c).T                               # (C, D)
    t3 = jnp.sum(lamda * c * c, axis=0)[:, None]      # (C, 1)

    # Lane-aligned spatial tile; pad ragged WH instead of refusing the shape.
    tile = min(tile_wh, _round_up(WH, 128))
    WH_pad = _round_up(WH, tile)
    if WH_pad != WH:
        x = jnp.pad(x, ((0, 0), (0, 0), (0, WH_pad - WH)))

    grid = (N, WH_pad // tile)

    out = pl.pallas_call(
        _membership_kernel,
        out_shape=jax.ShapeDtypeStruct((N, C, WH_pad), jnp.float32),
        grid_spec=pltpu.PrefetchScalarGridSpec(
            num_scalar_prefetch=0,
            grid=grid,
            in_specs=[
                pl.BlockSpec((1, D, tile), lambda n, j: (n, 0, j)),
                pl.BlockSpec((C, D), lambda n, j: (0, 0)),
                pl.BlockSpec((C, D), lambda n, j: (0, 0)),
                pl.BlockSpec((C, 1), lambda n, j: (0, 0)),
            ],
            out_specs=pl.BlockSpec((1, C, tile), lambda n, j: (n, 0, j)),
        ),
        compiler_params=pltpu.CompilerParams(
            dimension_semantics=("parallel", "parallel")),
    )(x, lamT, lcT, t3)

    if WH_pad != WH:
        out = out[:, :, :WH]
    return out


class MembershipNorm:
    """Mirror of Membership_norm_cuda.__init__ defaults: c=0, lamda=1."""

    def __init__(self, feature, class_num, init_c=None, init_lamda=None):
        if init_c is None:
            self.c = jnp.zeros((feature, class_num), dtype=jnp.float32)
        else:
            self.c = jnp.asarray(init_c, dtype=jnp.float32)
        if init_lamda is None:
            self.lamda = jnp.ones((feature, class_num), dtype=jnp.float32)
        else:
            self.lamda = jnp.asarray(init_lamda, dtype=jnp.float32)

    def __call__(self, x):
        return membership_forward(x, self.c, self.lamda)


def _reference(x, c, lamda):
    # Pure-JAX reference of the assumed semantics (direct sum lam*(x-c)^2).
    N, D, WH = x.shape
    xs = jnp.transpose(x, (0, 2, 1)).reshape(N * WH, D)          # (M, D)
    diff = xs[:, :, None] - c[None, :, :]                         # (M, D, C)
    dist = jnp.sum(lamda[None] * diff * diff, axis=1)             # (M, C)
    out = jnp.maximum(jnp.exp(-dist), MIN_CLIP)
    return jnp.transpose(out.reshape(N, WH, -1), (0, 2, 1))       # (N, C, WH)


if __name__ == "__main__":
    key = jax.random.PRNGKey(0)
    N, D, H, W, C = 2, 8, 16, 16, 8          # feature=8, class_num=8
    WH = H * W

    kx, kc, kl = jax.random.split(key, 3)
    x = jax.random.normal(kx, (N, D, WH), dtype=jnp.float32)

    # deterministic non-trivial params (module default would be c=0, lamda=1)
    init_c = 0.1 * jax.random.normal(kc, (D, C), dtype=jnp.float32)
    init_lamda = 1.0 + 0.05 * jax.random.normal(kl, (D, C), dtype=jnp.float32)

    mod = MembershipNorm(D, C, init_c=init_c, init_lamda=init_lamda)
    out = jax.block_until_ready(mod(x))

    ref = _reference(x, mod.c, mod.lamda)
    assert out.shape == (N, C, WH), out.shape
    assert jnp.allclose(out, ref, rtol=1e-5, atol=1e-5), float(
        jnp.max(jnp.abs(out - ref)))

    # also exercise a ragged spatial size (pad/slice path) at a tiny shape
    x2 = jax.random.normal(kx, (N, D, 200), dtype=jnp.float32)
    out2 = jax.block_until_ready(mod(x2))
    ref2 = _reference(x2, mod.c, mod.lamda)
    assert out2.shape == (N, C, 200), out2.shape
    assert jnp.allclose(out2, ref2, rtol=1e-5, atol=1e-5), float(
        jnp.max(jnp.abs(out2 - ref2)))

    print("KERNEL_OK")
</pallas_src>

<mosaic_0001>
module attributes {stable_mosaic.version = 11 : i64} {
  func.func @_membership_kernel(%arg0: i32, %arg1: i32, %arg2: memref<1x8x256xf32, #tpu.memory_space<vmem>>, %arg3: memref<8x8xf32, #tpu.memory_space<vmem>>, %arg4: memref<8x8xf32, #tpu.memory_space<vmem>>, %arg5: memref<8x1xf32, #tpu.memory_space<vmem>>, %arg6: memref<1x8x256xf32, #tpu.memory_space<vmem>>) attributes {dimension_semantics = [#tpu.dimension_semantics<parallel>, #tpu.dimension_semantics<parallel>], iteration_bounds = array<i64: 2, 1>, scalar_prefetch = 0 : i64, scratch_operands = 0 : i64, tpu.core_type = #tpu.core_type<tc>, window_params = [{transform_indices = @transform_0, window_bounds = array<i64: 1, 8, 256>}, {pipeline_mode = #tpu.pipeline_mode<synchronous>, transform_indices = @transform_1, window_bounds = array<i64: 8, 8>}, {pipeline_mode = #tpu.pipeline_mode<synchronous>, transform_indices = @transform_2, window_bounds = array<i64: 8, 8>}, {pipeline_mode = #tpu.pipeline_mode<synchronous>, transform_indices = @transform_3, window_bounds = array<i64: 8, 1>}, {transform_indices = @transform_4, window_bounds = array<i64: 1, 8, 256>}]} {
    %c0 = arith.constant 0 : index
    %c0_0 = arith.constant 0 : index
    %c0_1 = arith.constant 0 : index
    %0 = vector.load %arg2[%c0, %c0_0, %c0_1] : memref<1x8x256xf32, #tpu.memory_space<vmem>>, vector<1x8x256xf32>
    %1 = vector.shape_cast %0 : vector<1x8x256xf32> to vector<8x256xf32>
    %c0_2 = arith.constant 0 : index
    %c0_3 = arith.constant 0 : index
    %2 = vector.load %arg3[%c0_2, %c0_3] : memref<8x8xf32, #tpu.memory_space<vmem>>, vector<8x8xf32>
    %c0_4 = arith.constant 0 : index
    %c0_5 = arith.constant 0 : index
    %3 = vector.load %arg4[%c0_4, %c0_5] : memref<8x8xf32, #tpu.memory_space<vmem>>, vector<8x8xf32>
    %c0_6 = arith.constant 0 : index
    %c0_7 = arith.constant 0 : index
    %4 = vector.load %arg5[%c0_6, %c0_7] : memref<8x1xf32, #tpu.memory_space<vmem>>, vector<8x1xf32>
    %5 = arith.mulf %1, %1 : vector<8x256xf32>
    %cst = arith.constant dense<0.000000e+00> : vector<8x256xf32>
    %6 = tpu.matmul %2, %5, %cst {dimension_numbers = #tpu.dot_dimension_numbers<[1], [0], [0], [1], [0, 0, 1, 1], [], []>} : vector<8x8xf32>, vector<8x256xf32>, vector<8x256xf32> -> vector<8x256xf32>
    %cst_8 = arith.constant dense<0.000000e+00> : vector<8x256xf32>
    %7 = tpu.matmul %3, %1, %cst_8 {dimension_numbers = #tpu.dot_dimension_numbers<[1], [0], [0], [1], [0, 0, 1, 1], [], []>} : vector<8x8xf32>, vector<8x256xf32>, vector<8x256xf32> -> vector<8x256xf32>
    %cst_9 = arith.constant 2.000000e+00 : f32
    %8 = vector.broadcast %cst_9 : f32 to vector<8x256xf32>
    %9 = arith.mulf %8, %7 : vector<8x256xf32>
    %10 = arith.subf %6, %9 : vector<8x256xf32>
    %11 = vector.broadcast %4 : vector<8x1xf32> to vector<8x256xf32>
    %12 = arith.addf %10, %11 : vector<8x256xf32>
    %cst_10 = arith.constant 0.000000e+00 : f32
    %13 = vector.broadcast %cst_10 : f32 to vector<8x256xf32>
    %14 = arith.subf %13, %12 : vector<8x256xf32>
    %15 = math.exp %14 : vector<8x256xf32>
    %cst_11 = arith.constant 9.99999997E-7 : f32
    %16 = vector.broadcast %cst_11 : f32 to vector<8x256xf32>
    %17 = arith.maximumf %15, %16 : vector<8x256xf32>
    %c0_12 = arith.constant 0 : index
    %c0_13 = arith.constant 0 : index
    %c0_14 = arith.constant 0 : index
    %18 = vector.load %arg6[%c0_12, %c0_13, %c0_14] : memref<1x8x256xf32, #tpu.memory_space<vmem>>, vector<1x8x256xf32>
    %19 = vector.shape_cast %18 : vector<1x8x256xf32> to vector<8x256xf32>
    %20 = vector.shape_cast %17 : vector<8x256xf32> to vector<1x8x256xf32>
    tpu.vector_store %arg6[%c0_12, %c0_13, %c0_14], %20 {strides = array<i32>} : memref<1x8x256xf32, #tpu.memory_space<vmem>>, vector<1x8x256xf32>,
    return
  }
  func.func @transform_0(%arg0: i32, %arg1: i32) -> (i32, i32, i32) {
    %c0_i32 = arith.constant 0 : i32
    %c0_i32_0 = arith.constant 0 : i32
    return %arg0, %c0_i32, %arg1 : i32, i32, i32
  }
  func.func @transform_1(%arg0: i32, %arg1: i32) -> (i32, i32) {
    %c0_i32 = arith.constant 0 : i32
    %c0_i32_0 = arith.constant 0 : i32
    %c0_i32_1 = arith.constant 0 : i32
    return %c0_i32, %c0_i32_0 : i32, i32
  }
  func.func @transform_2(%arg0: i32, %arg1: i32) -> (i32, i32) {
    %c0_i32 = arith.constant 0 : i32
    %c0_i32_0 = arith.constant 0 : i32
    %c0_i32_1 = arith.constant 0 : i32
    return %c0_i32, %c0_i32_0 : i32, i32
  }
  func.func @transform_3(%arg0: i32, %arg1: i32) -> (i32, i32) {
    %c0_i32 = arith.constant 0 : i32
    %c0_i32_0 = arith.constant 0 : i32
    %c0_i32_1 = arith.constant 0 : i32
    return %c0_i32, %c0_i32_0 : i32, i32
  }
  func.func @transform_4(%arg0: i32, %arg1: i32) -> (i32, i32, i32) {
    %c0_i32 = arith.constant 0 : i32
    %c0_i32_0 = arith.constant 0 : i32
    return %arg0, %c0_i32, %arg1 : i32, i32, i32
  }
}

</mosaic_0001>

<llo_original>
// kernel: tpu_custom_call.1
$region0: #{tpu_custom_call.1}
  #allocation0 [shape = 'u32[]', space=smem, size = 0x4, offset = 0x4, fixed_abs, tag = 'smem constant byte address 0x4 - core index']
  #allocation1 [shape = 'u32[144,128]{1,0:T(1,128)}', space=vmem, size = 0x12000, scoped, tag = 'internal scratch']
  %s0 = inlined_call_operand.hbm [shape: f32[2,8,256], index: 0, kind: input, shape index: {}]
  %s1 = inlined_call_operand.vmem [shape: f32[8,8], index: 1, kind: input, shape index: {}]
  %s2 = inlined_call_operand.vmem [shape: f32[8,8], index: 2, kind: input, shape index: {}]
  %s3 = inlined_call_operand.vmem [shape: f32[8,1], index: 3, kind: input, shape index: {}]
  %s4 = inlined_call_operand.hbm [shape: f32[2,8,256], index: 4, kind: output, shape index: {}]
  %s5 = sld [smem:[#allocation0]]
  $region53: #{tpu_custom_call.1} parent=0
    _
  %s7 = ssub.s32 1, %s5
  %s8 = scalar_select 0, %s7, %s5
  $region1: #{tpu_custom_call.1} parent=0
    #allocation2 [shape = 'u8[16384]{0}', space=vmem, size = 0x4000, scoped, tag = 'input window, operand 0']
    #allocation3 [shape = 's32[2]{0}', space=sflag, size = 0x8, scoped, tag = 'scoped memory for tpu_custom_call.1']
    #allocation4 [shape = 's32[2]{0}', space=sflag, size = 0x8, scoped, tag = 'scoped memory for tpu_custom_call.1']
    #allocation5 [shape = 'u8[16384]{0}', space=vmem, size = 0x4000, scoped, tag = 'output window, operand 0']
    %9 = vsyncpa [#allocation3], 0
    %s10 = scalar_lea.sflag [#allocation3], 1
    %11 = vsyncpa %s10, 0
    %12 = vsyncpa [#allocation4], 0
    %s13 = scalar_lea.sflag [#allocation4], 1
    %14 = vsyncpa %s13, 0
    loop: start=0, step=1, limit=4
    $region2: #{tpu_custom_call.1} parent=1 // loop_pre_header
      _
    $region3: #{tpu_custom_call.1} parent=1 // loop_header
      %s16 = sphi 0, %s20
      %p17 = scmp.ge.s32.totalorder %s16, 4
      %s23 = sphi 0, %s35
      %s24 = sphi 0, %s31
      %s25 = sphi 0, %s23
      %s26 = sphi 0, %s24
      %s27 = sphi 0, %s25
      %s28 = sphi 0, %s26
      %s40 = sphi 0, %s42
      %s43 = sphi 0, %s40
      %s44 = sphi 0, %s43
      %s60 = sphi 0, %s44
      %s64 = sphi 0, %s64
      %s66 = sphi 0, %s64
      %s67 = sphi 0, %s66
      %s81 = sphi 0, %s67
      %s85 = sphi 0, %s85
      %s87 = sphi 0, %s85
      %s88 = sphi 0, %s87
      %s102 = sphi 0, %s88
      %s106 = sphi 0, %s106
      %s108 = sphi 0, %s106
      %s109 = sphi 0, %s108
      %s123 = sphi 0, %s109
      %s131 = sphi 0, %s133
      %s134 = sphi 0, %s131
      %s135 = sphi 0, %s134
      %s151 = sphi 0, %s135
    $region4: #{tpu_custom_call.1} parent=1 // loop_header_branch
      %19 = sbr.rel (%p17) target = $region8
    $region5: #{tpu_custom_call.1} parent=1 // loop_body
      %s21 = ssub.s32 %s16, 1
      %s22 = ssub.s32 %s16, 2
      %s29 = sadd.s32 1, %s24
      %p30 = scmp.ge.s32.totalorder %s29, 1
      %s31 = scalar_select %p30, 0, %s29
      %s32 = sadd.s32 1, %s23
      %s33 = scalar_select %p30, %s32, %s23
      %p34 = scmp.ge.s32.totalorder %s33, 2
      %s35 = scalar_select %p34, 0, %s33
      %s36 = ssub.s32 %s23, %s35
      %s37 = ssub.s32 %s24, %s31
      %s38 = sor.u32 %s36, %s37
      %p39 = scmp.eq.s32.totalorder %s38, 0
      %s41 = sadd.s32 %s40, 1
      %s42 = scalar_select %p39, %s40, %s41
      %p45 = pneg %p39
      %p46 = scmp.eq.s32.totalorder %s16, 1
      %p47 = por %p45, %p46
      %p48 = scmp.ne.s32.totalorder %s40, %s43
      %p49 = scmp.eq.s32.totalorder %s16, 0
      %p50 = por %p48, %p49
      %p51 = scmp.ne.s32.totalorder %s40, %s43
      %p52 = scmp.eq.s32.totalorder %s21, 1
      %p53 = por %p51, %p52
      %p54 = scmp.ne.s32.totalorder %s43, %s44
      %p55 = scmp.eq.s32.totalorder %s21, 0
      %p56 = por %p54, %p55
      %p57 = scmp.ne.s32.totalorder %s43, %s44
      %p58 = scmp.eq.s32.totalorder %s22, 1
      %p59 = por %p57, %p58
      %p61 = scmp.ne.s32.totalorder %s44, %s60
      %p62 = scmp.eq.s32.totalorder %s22, 0
      %p63 = por %p61, %p62
      %s65 = sadd.s32 %s64, 1
      %p68 = scmp.eq.s32.totalorder %s16, 1
      %p69 = scmp.ne.s32.totalorder %s64, %s66
      %p70 = scmp.eq.s32.totalorder %s16, 0
      %p71 = por %p69, %p70
      %p72 = scmp.ne.s32.totalorder %s64, %s66
      %p73 = scmp.eq.s32.totalorder %s21, 1
      %p74 = por %p72, %p73
      %p75 = scmp.ne.s32.totalorder %s66, %s67
      %p76 = scmp.eq.s32.totalorder %s21, 0
      %p77 = por %p75, %p76
      %p78 = scmp.ne.s32.totalorder %s66, %s67
      %p79 = scmp.eq.s32.totalorder %s22, 1
      %p80 = por %p78, %p79
      %p82 = scmp.ne.s32.totalorder %s67, %s81
      %p83 = scmp.eq.s32.totalorder %s22, 0
      %p84 = por %p82, %p83
      %s86 = sadd.s32 %s85, 1
      %p89 = scmp.eq.s32.totalorder %s16, 1
      %p90 = scmp.ne.s32.totalorder %s85, %s87
      %p91 = scmp.eq.s32.totalorder %s16, 0
      %p92 = por %p90, %p91
      %p93 = scmp.ne.s32.totalorder %s85, %s87
      %p94 = scmp.eq.s32.totalorder %s21, 1
      %p95 = por %p93, %p94
      %p96 = scmp.ne.s32.totalorder %s87, %s88
      %p97 = scmp.eq.s32.totalorder %s21, 0
      %p98 = por %p96, %p97
      %p99 = scmp.ne.s32.totalorder %s87, %s88
      %p100 = scmp.eq.s32.totalorder %s22, 1
      %p101 = por %p99, %p100
      %p103 = scmp.ne.s32.totalorder %s88, %s102
      %p104 = scmp.eq.s32.totalorder %s22, 0
      %p105 = por %p103, %p104
      %s107 = sadd.s32 %s106, 1
      %p110 = scmp.eq.s32.totalorder %s16, 1
      %p111 = scmp.ne.s32.totalorder %s106, %s108
      %p112 = scmp.eq.s32.totalorder %s16, 0
      %p113 = por %p111, %p112
      %p114 = scmp.ne.s32.totalorder %s106, %s108
      %p115 = scmp.eq.s32.totalorder %s21, 1
      %p116 = por %p114, %p115
      %p117 = scmp.ne.s32.totalorder %s108, %s109
      %p118 = scmp.eq.s32.totalorder %s21, 0
      %p119 = por %p117, %p118
      %p120 = scmp.ne.s32.totalorder %s108, %s109
      %p121 = scmp.eq.s32.totalorder %s22, 1
      %p122 = por %p120, %p121
      %p124 = scmp.ne.s32.totalorder %s109, %s123
      %p125 = scmp.eq.s32.totalorder %s22, 0
      %p126 = por %p124, %p125
      %s127 = ssub.s32 %s23, %s35
      %s128 = ssub.s32 %s24, %s31
      %s129 = sor.u32 %s127, %s128
      %p130 = scmp.eq.s32.totalorder %s129, 0
      %s132 = sadd.s32 %s131, 1
      %s133 = scalar_select %p130, %s131, %s132
      %p136 = pneg %p130
      %p137 = scmp.eq.s32.totalorder %s16, 1
      %p138 = por %p136, %p137
      %p139 = scmp.ne.s32.totalorder %s131, %s134
      %p140 = scmp.eq.s32.totalorder %s16, 0
      %p141 = por %p139, %p140
      %p142 = scmp.ne.s32.totalorder %s131, %s134
      %p143 = scmp.eq.s32.totalorder %s21, 1
      %p144 = por %p142, %p143
      %p145 = scmp.ne.s32.totalorder %s134, %s135
      %p146 = scmp.eq.s32.totalorder %s21, 0
      %p147 = por %p145, %p146
      %p148 = scmp.ne.s32.totalorder %s134, %s135
      %p149 = scmp.eq.s32.totalorder %s22, 1
      %p150 = por %p148, %p149
      %p152 = scmp.ne.s32.totalorder %s135, %s151
      %p153 = scmp.eq.s32.totalorder %s22, 0
      %p154 = por %p152, %p153
      %p155 = scmp.le.s32.totalorder 1, %s16
      %p156 = scmp.lt.s32.totalorder %s16, 3
      %p157 = pnand %p155, %p156
      %p158 = pneg %p157
      // Predicated region
      $region9: #{tpu_custom_call.1} parent=5 // pred_check
        _
      $region10: #{tpu_custom_call.1} parent=5 // pred_check_branch
        %160 = sbr.rel (%p157) target = $region12
      $region11: #{tpu_custom_call.1} parent=5 // pred_region
        %s161 = ssub.s32 %s16, 1
        // Predicated region
        $region13: #{tpu_custom_call.1} parent=11 // pred_check
          %p162 = pneg %p77
        $region14: #{tpu_custom_call.1} parent=11 // pred_check_branch
          %164 = sbr.rel (%p162) target = $region16
        $region15: #{tpu_custom_call.1} parent=11 // pred_region
          _
        $region16: #{tpu_custom_call.1} parent=11 // pred_fallthru
          _
        // Predicated region
        $region17: #{tpu_custom_call.1} parent=11 // pred_check
          %p165 = pneg %p98
        $region18: #{tpu_custom_call.1} parent=11 // pred_check_branch
          %167 = sbr.rel (%p165) target = $region20
        $region19: #{tpu_custom_call.1} parent=11 // pred_region
          _
        $region20: #{tpu_custom_call.1} parent=11 // pred_fallthru
          _
        // Predicated region
        $region21: #{tpu_custom_call.1} parent=11 // pred_check
          %p168 = pneg %p119
        $region22: #{tpu_custom_call.1} parent=11 // pred_check_branch
          %170 = sbr.rel (%p168) target = $region24
        $region23: #{tpu_custom_call.1} parent=11 // pred_region
          _
        $region24: #{tpu_custom_call.1} parent=11 // pred_fallthru
          _
      $region12: #{tpu_custom_call.1} parent=5 // pred_fallthru
        _
      %p171 = scmp.lt.s32.totalorder %s16, 2
      // Predicated region
      $region25: #{tpu_custom_call.1} parent=5 // pred_check
        %p172 = pneg %p171
      $region26: #{tpu_custom_call.1} parent=5 // pred_check_branch
        %174 = sbr.rel (%p172) target = $region28
      $region27: #{tpu_custom_call.1} parent=5 // pred_region
        // Predicated region
        $region29: #{tpu_custom_call.1} parent=27 // pred_check
          %p175 = pneg %p50
        $region30: #{tpu_custom_call.1} parent=27 // pred_check_branch
          %177 = sbr.rel (%p175) target = $region32
        $region31: #{tpu_custom_call.1} parent=27 // pred_region
          %s178 = sand.u32 %s40, 1
          %s179 = scalar_lea.sflag [#allocation3], %s178
          %s180 = sand.u32 %s40, 1
          %s181 = smul.addr %s180, 16
          %s182 = scalar_lea.vmem [#allocation2], %s181
          %s183 = smul.u32 2, %s24
          %s185 = ssub.s32 256, 256
          %186 = vsyncadd %s179, %s185
          %s187 = smul.addr %s23, 2
          %s188 = sadd.s32 %s183, %s187
          %s189 = smul.addr %s188, 128
          %s190 = scalar_lea.hbm %s0, %s189
          %s192 = sshll.u32 %s182, 4
          %s193 = int_to_ptr.vmem [resolvable:$true] %s192
          %195 = dma.hbm_to_vmem [thread:$0]  %s190, 256, %s193, %s179
        $region32: #{tpu_custom_call.1} parent=27 // pred_fallthru
          _
      $region28: #{tpu_custom_call.1} parent=5 // pred_fallthru
        _
      %p196 = scmp.le.s32.totalorder 1, %s16
      %p197 = scmp.lt.s32.totalorder %s16, 3
      %p198 = pnand %p196, %p197
      %p199 = pneg %p198
      // Predicated region
      $region33: #{tpu_custom_call.1} parent=5 // pred_check
        _
      $region34: #{tpu_custom_call.1} parent=5 // pred_check_branch
        %201 = sbr.rel (%p198) target = $region36
      $region35: #{tpu_custom_call.1} parent=5 // pred_region
        %s202 = ssub.s32 %s16, 1
        %s203 = sand.u32 %s43, 1
        %s204 = scalar_lea.sflag [#allocation3], %s203
        %s205 = sand.u32 %s43, 1
        %s206 = smul.addr %s205, 16
        %s207 = scalar_lea.vmem [#allocation2], %s206
        // Predicated region
        $region37: #{tpu_custom_call.1} parent=35 // pred_check
          %p208 = pneg %p56
        $region38: #{tpu_custom_call.1} parent=35 // pred_check_branch
          %210 = sbr.rel (%p208) target = $region40
        $region39: #{tpu_custom_call.1} parent=35 // pred_region
          %211 = dma.done %s204, 256
        $region40: #{tpu_custom_call.1} parent=35 // pred_fallthru
          _
        %s212 = sand.u32 %s43, 1
        %s213 = scalar_lea.sflag [#allocation3], %s212
        %s214 = sand.u32 %s43, 1
        %s215 = smul.addr %s214, 16
        %s216 = scalar_lea.vmem [#allocation2], %s215
        %p217 = pneg %p56
        %p218 = pneg %p53
        %p219 = pneg %p77
        %p220 = pneg %p74
        %p221 = pneg %p98
        %p222 = pneg %p95
        %p223 = pneg %p119
        %p224 = pneg %p116
        %p225 = pneg %p147
        %p226 = pneg %p144
        %s227 = sand.u32 %s134, 1
        %s228 = scalar_lea.sflag [#allocation4], %s227
        %s229 = sand.u32 %s134, 1
        %s230 = smul.addr %s229, 16
        %s231 = scalar_lea.vmem [#allocation5], %s230
        %s232 = smul.u32 2, %s26
        %s233 = smul.u32 2, %s26
        %v234 = vld [vmem:[%s207] sm:$0xff]
        %v235 = vld [vmem:[%s207 + $0x8] sm:$0xff]
        %v236 = vld [vmem:[%s1] sm:$0xff]
        %v237 = vld [vmem:[%s2] sm:$0xff]
        %v238 = vld [vmem:[%s3] sm:$0xff]
        %v239 = vmul.f32 %v234, %v234
        %v240 = vmul.f32 %v235, %v235
        %vm241 = vcmask 64512
        %v243 = vsel %vm241, %v236, 0
        %245 = vmatprep.subr.mxu0 %v240
        %246 = vmatpush1.msra.mxu0 %v239
        %247 = vmatprep.subr.mxu0 0.0
        %248 = vmatpush1.msra.mxu0 0.0
        %249 = vmatprep.subr.mxu0 0.0
        %250 = vmatpush1.msra.mxu0 0.0
        %251 = vmatprep.subr.mxu0 0.0
        %252 = vmatpush1.msra.mxu0 0.0
        %253 = vmatprep.subr.mxu0 0.0
        %254 = vmatpush1.msra.mxu0 0.0
        %255 = vmatprep.subr.mxu0 0.0
        %256 = vmatpush1.msra.mxu0 0.0
        %257 = vmatprep.subr.mxu0 0.0
        %258 = vmatpush1.msra.mxu0 0.0
        %259 = vmatprep.subr.mxu0 0.0
        %260 = vmatpush1.msra.mxu0 0.0
        %261 = vmatprep.subr.mxu0 0.0
        %262 = vmatpush1.msra.mxu0 0.0
        %263 = vmatprep.subr.mxu0 0.0
        %264 = vmatpush1.msra.mxu0 0.0
        %265 = vmatprep.subr.mxu0 0.0
        %266 = vmatpush1.msra.mxu0 0.0
        %267 = vmatprep.subr.mxu0 0.0
        %268 = vmatpush1.msra.mxu0 0.0
        %269 = vmatprep.subr.mxu0 0.0
        %270 = vmatpush1.msra.mxu0 0.0
        %271 = vmatprep.subr.mxu0 0.0
        %272 = vmatpush1.msra.mxu0 0.0
        %273 = vmatprep.subr.mxu0 0.0
        %274 = vmatpush1.msra.mxu0 0.0
        %275 = vmatprep.subr.mxu0 0.0
        %276 = vmatpush1.msra.mxu0 0.0
        %277 = vmatprep.subr.mxu0 0.0
        %278 = vmatpush1.msra.mxu0 0.0
        %279 = vmatprep.subr.mxu0 0.0
        %280 = vmatpush1.msra.mxu0 0.0
        %281 = vmatprep.subr.mxu0 0.0
        %282 = vmatpush1.msra.mxu0 0.0
        %283 = vmatprep.subr.mxu0 0.0
        %284 = vmatpush1.msra.mxu0 0.0
        %285 = vmatprep.subr.mxu0 0.0
        %286 = vmatpush1.msra.mxu0 0.0
        %287 = vmatprep.subr.mxu0 0.0
        %288 = vmatpush1.msra.mxu0 0.0
        %289 = vmatprep.subr.mxu0 0.0
        %290 = vmatpush1.msra.mxu0 0.0
        %291 = vmatprep.subr.mxu0 0.0
        %292 = vmatpush1.msra.mxu0 0.0
        %293 = vmatprep.subr.mxu0 0.0
        %294 = vmatpush1.msra.mxu0 0.0
        %295 = vmatprep.subr.mxu0 0.0
        %296 = vmatpush1.msra.mxu0 0.0
        %297 = vmatprep.subr.mxu0 0.0
        %298 = vmatpush1.msra.mxu0 0.0
        %299 = vmatprep.subr.mxu0 0.0
        %300 = vmatpush1.msra.mxu0 0.0
        %301 = vmatprep.subr.mxu0 0.0
        %302 = vmatpush1.msra.mxu0 0.0
        %303 = vmatprep.subr.mxu0 0.0
        %304 = vmatpush1.msra.mxu0 0.0
        %305 = vmatprep.subr.mxu0 0.0
        %306 = vmatpush1.msra.mxu0 0.0
        %307 = vmatprep.subr.mxu0 0.0
        %308 = vmatpush1.msra.mxu0 0.0
        %309 = vmatprep.mubr.f32.mxu0 0.0
        %310 = vmatmul.mubr.f32.gmra.mrb[0].mxu0 %v243
        %v311 = vpop.f32.mrb[0].mxu0
        %v312 = vadd.f32 0.0, %v311
        %v313 = vpop.f32.mrb[0].mxu0
        %v314 = vadd.f32 0.0, %v313
        %315 = vdwg.mxu0
        %v317 = vsel %vm241, %v237, 0
        %319 = vmatprep.subr.mxu0 %v235
        %320 = vmatpush1.msra.mxu0 %v234
        %321 = vmatprep.subr.mxu0 0.0
        %322 = vmatpush1.msra.mxu0 0.0
        %323 = vmatprep.subr.mxu0 0.0
        %324 = vmatpush1.msra.mxu0 0.0
        %325 = vmatprep.subr.mxu0 0.0
        %326 = vmatpush1.msra.mxu0 0.0
        %327 = vmatprep.subr.mxu0 0.0
        %328 = vmatpush1.msra.mxu0 0.0
        %329 = vmatprep.subr.mxu0 0.0
        %330 = vmatpush1.msra.mxu0 0.0
        %331 = vmatprep.subr.mxu0 0.0
        %332 = vmatpush1.msra.mxu0 0.0
        %333 = vmatprep.subr.mxu0 0.0
        %334 = vmatpush1.msra.mxu0 0.0
        %335 = vmatprep.subr.mxu0 0.0
        %336 = vmatpush1.msra.mxu0 0.0
        %337 = vmatprep.subr.mxu0 0.0
        %338 = vmatpush1.msra.mxu0 0.0
        %339 = vmatprep.subr.mxu0 0.0
        %340 = vmatpush1.msra.mxu0 0.0
        %341 = vmatprep.subr.mxu0 0.0
        %342 = vmatpush1.msra.mxu0 0.0
        %343 = vmatprep.subr.mxu0 0.0
        %344 = vmatpush1.msra.mxu0 0.0
        %345 = vmatprep.subr.mxu0 0.0
        %346 = vmatpush1.msra.mxu0 0.0
        %347 = vmatprep.subr.mxu0 0.0
        %348 = vmatpush1.msra.mxu0 0.0
        %349 = vmatprep.subr.mxu0 0.0
        %350 = vmatpush1.msra.mxu0 0.0
        %351 = vmatprep.subr.mxu0 0.0
        %352 = vmatpush1.msra.mxu0 0.0
        %353 = vmatprep.subr.mxu0 0.0
        %354 = vmatpush1.msra.mxu0 0.0
        %355 = vmatprep.subr.mxu0 0.0
        %356 = vmatpush1.msra.mxu0 0.0
        %357 = vmatprep.subr.mxu0 0.0
        %358 = vmatpush1.msra.mxu0 0.0
        %359 = vmatprep.subr.mxu0 0.0
        %360 = vmatpush1.msra.mxu0 0.0
        %361 = vmatprep.subr.mxu0 0.0
        %362 = vmatpush1.msra.mxu0 0.0
        %363 = vmatprep.subr.mxu0 0.0
        %364 = vmatpush1.msra.mxu0 0.0
        %365 = vmatprep.subr.mxu0 0.0
        %366 = vmatpush1.msra.mxu0 0.0
        %367 = vmatprep.subr.mxu0 0.0
        %368 = vmatpush1.msra.mxu0 0.0
        %369 = vmatprep.subr.mxu0 0.0
        %370 = vmatpush1.msra.mxu0 0.0
        %371 = vmatprep.subr.mxu0 0.0
        %372 = vmatpush1.msra.mxu0 0.0
        %373 = vmatprep.subr.mxu0 0.0
        %374 = vmatpush1.msra.mxu0 0.0
        %375 = vmatprep.subr.mxu0 0.0
        %376 = vmatpush1.msra.mxu0 0.0
        %377 = vmatprep.subr.mxu0 0.0
        %378 = vmatpush1.msra.mxu0 0.0
        %379 = vmatprep.subr.mxu0 0.0
        %380 = vmatpush1.msra.mxu0 0.0
        %381 = vmatprep.subr.mxu0 0.0
        %382 = vmatpush1.msra.mxu0 0.0
        %383 = vmatprep.mubr.f32.mxu0 0.0
        %384 = vmatmul.mubr.f32.gmra.mrb[0].mxu0 %v317
        %v385 = vpop.f32.mrb[0].mxu0
        %v386 = vadd.f32 0.0, %v385
        %v387 = vpop.f32.mrb[0].mxu0
        %v388 = vadd.f32 0.0, %v387
        %389 = vdwg.mxu0
        %v390 = vmul.f32 %v386, 2.0
        %v391 = vmul.f32 %v388, 2.0
        %v392 = vsub.f32 %v312, %v390
        %v393 = vsub.f32 %v314, %v391
        %395 = vset.pattern.permute.xlu0 0
        %396 = vperm.xlu0 %395, %v238
        %v397 = vpop.permute.xlu0 %396
        %v399 = vadd.f32 %v392, %v397
        %v400 = vadd.f32 %v393, %v397
        %v401 = vsub.f32 0.0, %v399
        %v402 = vsub.f32 0.0, %v400
        %v403 = vmul.f32 %v401, 1.442695
        %v404 = vpow.pop %v403
        %v405 = vmul.f32 %v402, 1.442695
        %v406 = vpow.pop %v405
        %v407 = vmax.f32 %v404, 1e-06
        %v408 = vmax.f32 %v406, 1e-06
        %409 = vst [vmem:[%s231] sm:$0xff] %v407
        %410 = vst [vmem:[%s231 + $0x8] sm:$0xff] %v408
        %s411 = sand.u32 %s134, 1
        %s412 = scalar_lea.sflag [#allocation4], %s411
        %s413 = sand.u32 %s134, 1
        %s414 = smul.addr %s413, 16
        %s415 = scalar_lea.vmem [#allocation5], %s414
        // Predicated region
        $region41: #{tpu_custom_call.1} parent=35 // pred_check
          %p416 = pneg %p144
        $region42: #{tpu_custom_call.1} parent=35 // pred_check_branch
          %418 = sbr.rel (%p416) target = $region44
        $region43: #{tpu_custom_call.1} parent=35 // pred_region
          %s419 = smul.u32 2, %s26
          %s421 = ssub.s32 256, 256
          %422 = vsyncadd %s412, %s421
          %s423 = smul.addr %s25, 2
          %s424 = sadd.s32 %s419, %s423
          %s425 = smul.addr %s424, 128
          %s426 = scalar_lea.hbm %s4, %s425
          %s428 = sshll.u32 %s415, 4
          %s429 = int_to_ptr.vmem [resolvable:$true] %s428
          %431 = dma.vmem_to_hbm [thread:$0]  %s429, 256, %s426, %s412
        $region44: #{tpu_custom_call.1} parent=35 // pred_fallthru
          _
      $region36: #{tpu_custom_call.1} parent=5 // pred_fallthru
        _
      %p432 = scmp.le.s32.totalorder 2, %s16
      // Predicated region
      $region45: #{tpu_custom_call.1} parent=5 // pred_check
        %p433 = pneg %p432
      $region46: #{tpu_custom_call.1} parent=5 // pred_check_branch
        %435 = sbr.rel (%p433) target = $region48
      $region47: #{tpu_custom_call.1} parent=5 // pred_region
        %s436 = ssub.s32 %s16, 2
        // Predicated region
        $region49: #{tpu_custom_call.1} parent=47 // pred_check
          %p437 = pneg %p150
        $region50: #{tpu_custom_call.1} parent=47 // pred_check_branch
          %439 = sbr.rel (%p437) target = $region52
        $region51: #{tpu_custom_call.1} parent=47 // pred_region
          %s440 = sand.u32 %s135, 1
          %s441 = scalar_lea.sflag [#allocation4], %s440
          %s442 = sand.u32 %s135, 1
          %s443 = smul.addr %s442, 16
          %s444 = scalar_lea.vmem [#allocation5], %s443
          %445 = dma.done %s441, 256
        $region52: #{tpu_custom_call.1} parent=47 // pred_fallthru
          _
      $region48: #{tpu_custom_call.1} parent=5 // pred_fallthru
        _
    $region6: #{tpu_custom_call.1} parent=1 // loop_footer
      %s20 = sadd.s32 1, %s16
    $region7: #{tpu_custom_call.1} parent=1 // loop_footer_branch
      %15 = sbr.rel target = $region3
    $region8: #{tpu_custom_call.1} parent=1 // loop_exit
      _
    %446 = vsyncpa [#allocation3], 1
    %s447 = scalar_lea.sflag [#allocation3], 1
    %448 = vsyncpa %s447, 1
    %449 = vsyncpa [#allocation4], 1
    %s450 = scalar_lea.sflag [#allocation4], 1
    %451 = vsyncpa %s450, 1

</llo_original>
